<compile_context>
chip_gen: v7x
topology: tpu7x:2x2x1
jax: 0.10.0
libtpu: 0.0.40
codegen_flags: <defaults>
</compile_context>

<pallas_src>
import functools
import math

import jax
import jax.numpy as jnp
from jax.experimental import pallas as pl
from jax.experimental.pallas import tpu as pltpu

_LANES = 128
_VMEM_LIMIT_BYTES = 48 * 1024 * 1024  # safe on v5e/v6e (128 MiB) and v7x (64 MiB)


def _swish_kernel(x_ref, o_ref, *, compute_dtype):
    # swish(x) = x * sigmoid(x) = 0.5*x * (tanh(0.5*x) + 1)
    # NOTE: edge blocks may contain garbage lanes/rows past the array extent;
    # tanh is bounded and the out-of-range part of the store is masked.
    x = x_ref[...].astype(compute_dtype)
    half = jnp.asarray(0.5, compute_dtype)
    one = jnp.asarray(1.0, compute_dtype)
    hx = half * x
    o_ref[...] = (hx * (jnp.tanh(hx) + one)).astype(o_ref.dtype)


def _default_block_bytes() -> int:
    # ~8 MiB blocks on v7x (3.2 TB/s HBM -> halves per-step overhead share),
    # ~4 MiB elsewhere (already ~85% of roofline on v6e, <5% overhead on v5e).
    try:
        kind = jax.devices()[0].device_kind.lower()
    except Exception:  # pragma: no cover - defensive
        return 4 * 1024 * 1024
    if "v7" in kind:
        return 8 * 1024 * 1024
    return 4 * 1024 * 1024


def _choose_tiles(rows, cols, itemsize, target_block_bytes):
    """Pick (tile_rows, tile_cols) for the collapsed (rows, cols) view."""
    total_bytes = rows * cols * itemsize

    # Keep enough grid steps for software pipelining (DMA/compute overlap) and
    # for sharding the "parallel" axes across v7x's two TensorCores.
    if total_bytes > 2 * 1024 * 1024:
        eff_target = min(target_block_bytes, pl.cdiv(total_bytes, 8))
    elif total_bytes > 256 * 1024:
        eff_target = min(target_block_bytes, pl.cdiv(total_bytes, 2))
    else:
        eff_target = target_block_bytes

    # Sublane packing: 8 (f32) / 16 (bf16,f16) / 32 (int8/fp8) rows per vreg.
    sub = max(8, 32 // itemsize)

    if cols % _LANES == 0:
        # Lane-tileable: full width unless that blows the budget at the
        # minimum sublane height.
        row_unit = min(sub, rows)
        max_cols = max(_LANES,
                       (eff_target // (row_unit * itemsize)) // _LANES * _LANES)
        tile_cols = min(cols, max_cols)
    else:
        # Unaligned trailing dim: the block must span the whole dim (legal
        # because it equals the array extent).  This is what lets us skip the
        # relayout copy a ravel/reshape-to-128 would force.
        # (Pathological very-long unaligned trailing dims would need a padded
        # fallback; activation shapes never hit that.)
        tile_cols = cols

    max_rows = max(sub, (eff_target // (tile_cols * itemsize)) // sub * sub)
    tile_rows = min(rows, max_rows)
    return tile_rows, tile_cols


def swish(x: jax.Array, *, target_block_bytes: int | None = None,
          donate_input: bool = False) -> jax.Array:
    """Elementwise swish: x * sigmoid(x). Shape and dtype preserved."""
    orig_shape = x.shape
    orig_dtype = x.dtype
    n = x.size
    if n == 0:
        return x

    itemsize = jnp.dtype(orig_dtype).itemsize
    if target_block_bytes is None:
        target_block_bytes = _default_block_bytes()

    # Compute dtype: keep bf16/f16 native; everything else computes in f32.
    if orig_dtype in (jnp.bfloat16, jnp.float16):
        compute_dtype = orig_dtype
    else:
        compute_dtype = jnp.float32

    # ---- collapse LEADING dims only: bitcast reshape, no relayout ----------
    if x.ndim >= 2:
        rows = math.prod(orig_shape[:-1])
        cols = orig_shape[-1]
    elif x.ndim == 1:
        rows, cols = 1, orig_shape[0]
    else:  # scalar
        rows, cols = 1, 1
    x2d = x.reshape(rows, cols)

    tile_rows, tile_cols = _choose_tiles(rows, cols, itemsize, target_block_bytes)
    grid = (pl.cdiv(rows, tile_rows), pl.cdiv(cols, tile_cols))

    kernel = functools.partial(_swish_kernel, compute_dtype=compute_dtype)
    cost = pl.CostEstimate(flops=4 * n, transcendentals=n,
                           bytes_accessed=2 * n * itemsize)

    out2d = pl.pallas_call(
        kernel,
        out_shape=jax.ShapeDtypeStruct((rows, cols), orig_dtype),
        grid=grid,
        in_specs=[pl.BlockSpec((tile_rows, tile_cols), lambda i, j: (i, j))],
        out_specs=pl.BlockSpec((tile_rows, tile_cols), lambda i, j: (i, j)),
        compiler_params=pltpu.CompilerParams(
            dimension_semantics=("parallel", "parallel"),
            vmem_limit_bytes=_VMEM_LIMIT_BYTES,
        ),
        cost_estimate=cost,
        input_output_aliases=({0: 0} if donate_input else {}),
    )(x2d)

    return out2d.reshape(orig_shape)


if __name__ == "__main__":
    key = jax.random.PRNGKey(0)

    # Module-implied input: NCHW (B=2, C=4, H=16, W=16), f32.
    x = jax.random.normal(key, (2, 4, 16, 16), dtype=jnp.float32)
    y = swish(x)
    jax.block_until_ready(y)
    y_ref = x * jax.nn.sigmoid(x)
    assert y.shape == x.shape and y.dtype == x.dtype
    assert jnp.allclose(y, y_ref, atol=1e-5, rtol=1e-5)

    # Multi-step row grid, unaligned trailing dim (no relayout copies).
    x2 = jax.random.normal(jax.random.PRNGKey(1), (4, 8, 64, 64), dtype=jnp.float32)
    y2 = swish(x2, target_block_bytes=64 * 1024)
    jax.block_until_ready(y2)
    assert jnp.allclose(y2, x2 * jax.nn.sigmoid(x2), atol=1e-5, rtol=1e-5)

    # Aligned trailing dim -> lane-tiled 2-D grid path.
    x3 = jax.random.normal(jax.random.PRNGKey(2), (16, 512), dtype=jnp.float32)
    y3 = swish(x3, target_block_bytes=8 * 1024)
    jax.block_until_ready(y3)
    assert jnp.allclose(y3, x3 * jax.nn.sigmoid(x3), atol=1e-5, rtol=1e-5)

    # Small odd shape: full-extent block, single grid step.
    x4 = jax.random.normal(jax.random.PRNGKey(3), (3, 5, 7), dtype=jnp.float32)
    y4 = swish(x4)
    jax.block_until_ready(y4)
    assert jnp.allclose(y4, x4 * jax.nn.sigmoid(x4), atol=1e-5, rtol=1e-5)

    # bf16 path computes natively -> half-precision tolerance vs f32 reference.
    x5 = jax.random.normal(jax.random.PRNGKey(4), (2, 8, 128), dtype=jnp.bfloat16)
    y5 = swish(x5)
    jax.block_until_ready(y5)
    ref5 = (x5.astype(jnp.float32) * jax.nn.sigmoid(x5.astype(jnp.float32)))
    assert y5.dtype == jnp.bfloat16
    assert jnp.allclose(y5.astype(jnp.float32), ref5, atol=2e-2, rtol=2e-2)

    print("KERNEL_OK")
</pallas_src>

<mosaic_0001>
module attributes {stable_mosaic.version = 11 : i64} {
  func.func @_swish_kernel(%arg0: i32, %arg1: i32, %arg2: memref<128x16xf32, #tpu.memory_space<vmem>>, %arg3: memref<128x16xf32, #tpu.memory_space<vmem>>) attributes {dimension_semantics = [#tpu.dimension_semantics<parallel>, #tpu.dimension_semantics<parallel>], iteration_bounds = array<i64: 1, 1>, scalar_prefetch = 0 : i64, scratch_operands = 0 : i64, tpu.core_type = #tpu.core_type<tc>, window_params = [{transform_indices = @transform_0, window_bounds = array<i64: 128, 16>}, {transform_indices = @transform_1, window_bounds = array<i64: 128, 16>}]} {
    %c0 = arith.constant 0 : index
    %c0_0 = arith.constant 0 : index
    %0 = vector.load %arg2[%c0, %c0_0] : memref<128x16xf32, #tpu.memory_space<vmem>>, vector<128x16xf32>
    %cst = arith.constant 5.000000e-01 : f32
    %1 = vector.broadcast %cst : f32 to vector<128x16xf32>
    %2 = arith.mulf %1, %0 : vector<128x16xf32>
    %3 = math.tanh %2 : vector<128x16xf32>
    %cst_1 = arith.constant 1.000000e+00 : f32
    %4 = vector.broadcast %cst_1 : f32 to vector<128x16xf32>
    %5 = arith.addf %3, %4 : vector<128x16xf32>
    %6 = arith.mulf %2, %5 : vector<128x16xf32>
    %c0_2 = arith.constant 0 : index
    %c0_3 = arith.constant 0 : index
    %7 = vector.load %arg3[%c0_2, %c0_3] : memref<128x16xf32, #tpu.memory_space<vmem>>, vector<128x16xf32>
    tpu.vector_store %arg3[%c0_2, %c0_3], %6 {strides = array<i32>} : memref<128x16xf32, #tpu.memory_space<vmem>>, vector<128x16xf32>,
    return
  }
  func.func @transform_0(%arg0: i32, %arg1: i32) -> (i32, i32) {
    %c0_i32 = arith.constant 0 : i32
    return %arg0, %arg1 : i32, i32
  }
  func.func @transform_1(%arg0: i32, %arg1: i32) -> (i32, i32) {
    %c0_i32 = arith.constant 0 : i32
    return %arg0, %arg1 : i32, i32
  }
}

</mosaic_0001>

<llo_original>
// kernel: tpu_custom_call.1
$region0: #{tpu_custom_call.1}
  #allocation0 [shape = 'u32[]', space=smem, size = 0x4, offset = 0x4, fixed_abs, tag = 'smem constant byte address 0x4 - core index']
  #allocation1 [shape = 'u32[144,128]{1,0:T(1,128)}', space=vmem, size = 0x12000, scoped, tag = 'internal scratch']
  %s0 = inlined_call_operand.vmem [shape: f32[128,16], index: 0, kind: input, shape index: {}]
  %s1 = inlined_call_operand.vmem [shape: f32[128,16], index: 1, kind: output, shape index: {}]
  %s2 = sld [smem:[#allocation0]]
  $region14: #{tpu_custom_call.1} parent=0
    _
  %s4 = ssub.s32 1, %s2
  %s5 = scalar_select 0, %s4, %s2
  // Predicated region
  $region2: #{tpu_custom_call.1} parent=0 // pred_check
    _
  $region3: #{tpu_custom_call.1} parent=0 // pred_check_branch
    %7 = sbr.rel (0) target = $region5
  $region4: #{tpu_custom_call.1} parent=0 // pred_region
    _
  $region5: #{tpu_custom_call.1} parent=0 // pred_fallthru
    _
  %v8 = vld [vmem:[%s0] sm:$0xff]
  %v9 = vld [vmem:[%s0 + $0x8] sm:$0xff]
  %v10 = vld [vmem:[%s0 + $0x10] sm:$0xff]
  %v11 = vld [vmem:[%s0 + $0x18] sm:$0xff]
  %v12 = vld [vmem:[%s0 + $0x20] sm:$0xff]
  %v13 = vld [vmem:[%s0 + $0x28] sm:$0xff]
  %v14 = vld [vmem:[%s0 + $0x30] sm:$0xff]
  %v15 = vld [vmem:[%s0 + $0x38] sm:$0xff]
  %v16 = vld [vmem:[%s0 + $0x40] sm:$0xff]
  %v17 = vld [vmem:[%s0 + $0x48] sm:$0xff]
  %v18 = vld [vmem:[%s0 + $0x50] sm:$0xff]
  %v19 = vld [vmem:[%s0 + $0x58] sm:$0xff]
  %v20 = vld [vmem:[%s0 + $0x60] sm:$0xff]
  %v21 = vld [vmem:[%s0 + $0x68] sm:$0xff]
  %v22 = vld [vmem:[%s0 + $0x70] sm:$0xff]
  %v23 = vld [vmem:[%s0 + $0x78] sm:$0xff]
  %v24 = vmul.f32 %v8, 0.5
  %v25 = vmul.f32 %v9, 0.5
  %v26 = vmul.f32 %v10, 0.5
  %v27 = vmul.f32 %v11, 0.5
  %v28 = vmul.f32 %v12, 0.5
  %v29 = vmul.f32 %v13, 0.5
  %v30 = vmul.f32 %v14, 0.5
  %v31 = vmul.f32 %v15, 0.5
  %v32 = vmul.f32 %v16, 0.5
  %v33 = vmul.f32 %v17, 0.5
  %v34 = vmul.f32 %v18, 0.5
  %v35 = vmul.f32 %v19, 0.5
  %v36 = vmul.f32 %v20, 0.5
  %v37 = vmul.f32 %v21, 0.5
  %v38 = vmul.f32 %v22, 0.5
  %v39 = vmul.f32 %v23, 0.5
  %v40 = vtanh.pop %v24
  %v41 = vtanh.pop %v25
  %v42 = vtanh.pop %v26
  %v43 = vtanh.pop %v27
  %v44 = vtanh.pop %v28
  %v45 = vtanh.pop %v29
  %v46 = vtanh.pop %v30
  %v47 = vtanh.pop %v31
  %v48 = vtanh.pop %v32
  %v49 = vtanh.pop %v33
  %v50 = vtanh.pop %v34
  %v51 = vtanh.pop %v35
  %v52 = vtanh.pop %v36
  %v53 = vtanh.pop %v37
  %v54 = vtanh.pop %v38
  %v55 = vtanh.pop %v39
  %v56 = vadd.f32 %v40, 1.0
  %v57 = vadd.f32 %v41, 1.0
  %v58 = vadd.f32 %v42, 1.0
  %v59 = vadd.f32 %v43, 1.0
  %v60 = vadd.f32 %v44, 1.0
  %v61 = vadd.f32 %v45, 1.0
  %v62 = vadd.f32 %v46, 1.0
  %v63 = vadd.f32 %v47, 1.0
  %v64 = vadd.f32 %v48, 1.0
  %v65 = vadd.f32 %v49, 1.0
  %v66 = vadd.f32 %v50, 1.0
  %v67 = vadd.f32 %v51, 1.0
  %v68 = vadd.f32 %v52, 1.0
  %v69 = vadd.f32 %v53, 1.0
  %v70 = vadd.f32 %v54, 1.0
  %v71 = vadd.f32 %v55, 1.0
  %v72 = vmul.f32 %v24, %v56
  %v73 = vmul.f32 %v25, %v57
  %v74 = vmul.f32 %v26, %v58
  %v75 = vmul.f32 %v27, %v59
  %v76 = vmul.f32 %v28, %v60
  %v77 = vmul.f32 %v29, %v61
  %v78 = vmul.f32 %v30, %v62
  %v79 = vmul.f32 %v31, %v63
  %v80 = vmul.f32 %v32, %v64
  %v81 = vmul.f32 %v33, %v65
  %v82 = vmul.f32 %v34, %v66
  %v83 = vmul.f32 %v35, %v67
  %v84 = vmul.f32 %v36, %v68
  %v85 = vmul.f32 %v37, %v69
  %v86 = vmul.f32 %v38, %v70
  %v87 = vmul.f32 %v39, %v71
  %vm88 = vcmask 130048
  %89 = vst.msk [vmem:[%s1] sm:$0xff] %vm88, %v72
  %90 = vst.msk [vmem:[%s1 + $0x8] sm:$0xff] %vm88, %v73
  %91 = vst.msk [vmem:[%s1 + $0x10] sm:$0xff] %vm88, %v74
  %92 = vst.msk [vmem:[%s1 + $0x18] sm:$0xff] %vm88, %v75
  %93 = vst.msk [vmem:[%s1 + $0x20] sm:$0xff] %vm88, %v76
  %94 = vst.msk [vmem:[%s1 + $0x28] sm:$0xff] %vm88, %v77
  %95 = vst.msk [vmem:[%s1 + $0x30] sm:$0xff] %vm88, %v78
  %96 = vst.msk [vmem:[%s1 + $0x38] sm:$0xff] %vm88, %v79
  %97 = vst.msk [vmem:[%s1 + $0x40] sm:$0xff] %vm88, %v80
  %98 = vst.msk [vmem:[%s1 + $0x48] sm:$0xff] %vm88, %v81
  %99 = vst.msk [vmem:[%s1 + $0x50] sm:$0xff] %vm88, %v82
  %100 = vst.msk [vmem:[%s1 + $0x58] sm:$0xff] %vm88, %v83
  %101 = vst.msk [vmem:[%s1 + $0x60] sm:$0xff] %vm88, %v84
  %102 = vst.msk [vmem:[%s1 + $0x68] sm:$0xff] %vm88, %v85
  %103 = vst.msk [vmem:[%s1 + $0x70] sm:$0xff] %vm88, %v86
  %104 = vst.msk [vmem:[%s1 + $0x78] sm:$0xff] %vm88, %v87
  // Predicated region
  $region6: #{tpu_custom_call.1} parent=0 // pred_check
    _
  $region7: #{tpu_custom_call.1} parent=0 // pred_check_branch
    %106 = sbr.rel (0) target = $region9
  $region8: #{tpu_custom_call.1} parent=0 // pred_region
    _
  $region9: #{tpu_custom_call.1} parent=0 // pred_fallthru
    _
  // Predicated region
  $region10: #{tpu_custom_call.1} parent=0 // pred_check
    _
  $region11: #{tpu_custom_call.1} parent=0 // pred_check_branch
    %108 = sbr.rel (0) target = $region13
  $region12: #{tpu_custom_call.1} parent=0 // pred_region
    _
  $region13: #{tpu_custom_call.1} parent=0 // pred_fallthru
    _

</llo_original>
